<compile_context>
chip_gen: v5e
topology: v5e:2x2
jax: 0.10.0
libtpu: 0.0.40
codegen_flags: <defaults>
</compile_context>

<pallas_src>
import functools
import math

import jax
import jax.numpy as jnp
from jax.experimental import pallas as pl
from jax.experimental.pallas import tpu as pltpu


def _round_up(x, m):
    return (x + m - 1) // m * m


# ----------------------------------------------------------------------------------
# Tiled dense (linear / 1x1 conv), optional fused residual add + relu epilogue.
# Accumulates directly into the resident f32 output block (no scratch).
# ----------------------------------------------------------------------------------

def _dense_kernel(*refs, activation, nk, has_residual):
    if has_residual:
        x_ref, w_ref, b_ref, r_ref, o_ref = refs
    else:
        x_ref, w_ref, b_ref, o_ref = refs
        r_ref = None
    k = pl.program_id(1)

    @pl.when(k == 0)
    def _():
        o_ref[...] = jnp.zeros_like(o_ref)

    o_ref[...] += jnp.dot(x_ref[...].astype(jnp.bfloat16), w_ref[...],
                          preferred_element_type=jnp.float32)

    @pl.when(k == nk - 1)
    def _():
        r = o_ref[...] + b_ref[...]
        if has_residual:
            r = r + r_ref[...]
        if activation == "relu":
            r = jnp.maximum(r, 0.0)
        o_ref[...] = r


def dense(x, w, b, activation=None, residual=None, tm=256, tk=256):
    """x: (M, K) f32, w: (K, N), b: (N,)  ->  (M, N) f32.
    Tiled over M (parallel) and K (arbitrary); bf16 MXU operands, f32 accumulation."""
    M, K = x.shape
    N = w.shape[1]
    tm = min(tm, _round_up(M, 8))
    Mp = _round_up(M, tm)
    if K > tk:
        tkk = tk
        Kp = _round_up(K, tk)
    else:
        tkk = K
        Kp = K
    xp = x
    if Mp != M or Kp != K:
        xp = jnp.pad(x, ((0, Mp - M), (0, Kp - K)))
    wp = w if Kp == K else jnp.pad(w, ((0, Kp - K), (0, 0)))
    wp = wp.astype(jnp.bfloat16)
    nk = Kp // tkk
    grid = (Mp // tm, nk)

    in_specs = [
        pl.BlockSpec((tm, tkk), lambda i, k: (i, k)),
        pl.BlockSpec((tkk, N), lambda i, k: (k, 0)),
        pl.BlockSpec((1, N), lambda i, k: (0, 0)),
    ]
    inputs = [xp, wp, b.reshape(1, N)]
    if residual is not None:
        rp = residual if Mp == M else jnp.pad(residual, ((0, Mp - M), (0, 0)))
        in_specs.append(pl.BlockSpec((tm, N), lambda i, k: (i, 0)))
        inputs.append(rp)

    out = pl.pallas_call(
        functools.partial(_dense_kernel, activation=activation, nk=nk,
                          has_residual=residual is not None),
        grid=grid,
        in_specs=in_specs,
        out_specs=pl.BlockSpec((tm, N), lambda i, k: (i, 0)),
        out_shape=jax.ShapeDtypeStruct((Mp, N), jnp.float32),
        compiler_params=pltpu.CompilerParams(
            dimension_semantics=("parallel", "arbitrary")),
    )(*inputs)
    return out[:M] if Mp != M else out


# ----------------------------------------------------------------------------------
# 3x3 conv, stride 1, pad 1: row-tiled, manual halo DMA, 9-tap accumulation.
# ----------------------------------------------------------------------------------

def _conv3x3_kernel(x_hbm, w_ref, b_ref, o_ref, slab_ref, sem,
                    *, Wp, W, tile_h, activation):
    b = pl.program_id(0)
    i = pl.program_id(1)
    M = tile_h * Wp                       # flat output positions per tile (incl. garbage cols)

    # DMA the (tile_h + 3) padded rows this tile needs (2 halo + 1 spare for the
    # flat-slice trick) from HBM into a VMEM slab.
    start = pl.multiple_of(i * M, M)      # row tile offset in flat padded coords
    length = slab_ref.shape[0]            # (tile_h + 3) * Wp
    cp = pltpu.make_async_copy(x_hbm.at[b, pl.ds(start, length)], slab_ref, sem)
    cp.start()
    cp.wait()
    # TODO(synk): double-buffer the slab DMA (prefetch tile i+1 while computing i).

    Cout = o_ref.shape[-1]
    acc = None
    for dy in range(3):
        # Sublane-aligned base load (dy*Wp is a multiple of 8); the dx shift is then a
        # cheap on-chip slice of the loaded value instead of 9 separate slab reloads.
        base = slab_ref[pl.ds(dy * Wp, M + 8), :]
        for dx in range(3):
            sh = base[dx:dx + M, :].astype(jnp.bfloat16)
            t = jnp.dot(sh, w_ref[dy, dx], preferred_element_type=jnp.float32)
            acc = t if acc is None else acc + t
    acc = acc + b_ref[...]
    if activation == "relu":
        acc = jnp.maximum(acc, 0.0)
    # Emit the cropped NHWC tile directly (garbage Wp-boundary columns dropped here).
    o_ref[0] = acc.reshape(tile_h, Wp, Cout)[:, :W, :].astype(o_ref.dtype)


def conv3x3_nhwc(x, w, b, activation=None, tile_h=32):
    """x: (B, H, W, Cin) f32, w: (3, 3, Cin, Cout), b: (Cout,)  ->  (B, H, W, Cout) f32.
    Zero-padded image is flattened per batch; each grid step covers tile_h output rows."""
    B, H, W, Cin = x.shape
    Cout = w.shape[-1]
    tile_h = min(tile_h, H)
    n_tiles = -(-H // tile_h)
    Ht = n_tiles * tile_h
    Wp = _round_up(W + 2, 8)              # left halo 1, right halo >= 1, sublane aligned
    Hp = Ht + 3                           # top halo 1, bottom halo/spare rows
    xp = jnp.pad(x, ((0, 0), (1, Hp - 1 - H), (1, Wp - 1 - W), (0, 0)))
    xf = xp.reshape(B, Hp * Wp, Cin)
    wb = w.astype(jnp.bfloat16)

    out = pl.pallas_call(
        functools.partial(_conv3x3_kernel, Wp=Wp, W=W, tile_h=tile_h,
                          activation=activation),
        grid=(B, n_tiles),
        in_specs=[
            pl.BlockSpec(memory_space=pl.ANY),                      # raw HBM, manual DMA
            pl.BlockSpec((3, 3, Cin, Cout), lambda b, i: (0, 0, 0, 0)),
            pl.BlockSpec((1, Cout), lambda b, i: (0, 0)),
        ],
        out_specs=pl.BlockSpec((1, tile_h, W, Cout), lambda b, i: (b, i, 0, 0)),
        out_shape=jax.ShapeDtypeStruct((B, Ht, W, Cout), jnp.float32),
        scratch_shapes=[
            pltpu.VMEM(((tile_h + 3) * Wp, Cin), jnp.float32),
            pltpu.SemaphoreType.DMA,
        ],
        compiler_params=pltpu.CompilerParams(
            dimension_semantics=("parallel", "parallel")),
    )(xf, wb, b.reshape(1, Cout))
    return out[:, :H] if Ht != H else out


# ----------------------------------------------------------------------------------
# Fused transformer-encoder-layer kernels (post-norm, inference: dropout = identity)
# ----------------------------------------------------------------------------------

def _qkv_kernel(x_ref, p_ref, wqk_ref, wv_ref, bqk_ref, bv_ref,
                q_ref, k_ref, v_ref, *, D):
    x = x_ref[...]
    xp = (x + p_ref[...]).astype(jnp.bfloat16)        # q = k = src + pos
    qk = jnp.dot(xp, wqk_ref[...], preferred_element_type=jnp.float32) + bqk_ref[...]
    q_ref[...] = qk[:, :D]
    k_ref[...] = qk[:, D:]
    v_ref[...] = (jnp.dot(x.astype(jnp.bfloat16), wv_ref[...],
                          preferred_element_type=jnp.float32) + bv_ref[...])


def qkv_project(x, pos, wqk, bqk, wv, bv, D, tm=512):
    """Fused q|k projection (one (D, 2D) matmul, scale folded into q half) + v projection."""
    M, _ = x.shape
    tm = min(tm, _round_up(M, 8))
    Mp = _round_up(M, tm)
    if Mp != M:
        x = jnp.pad(x, ((0, Mp - M), (0, 0)))
        pos = jnp.pad(pos, ((0, Mp - M), (0, 0)))
    row = pl.BlockSpec((tm, D), lambda i: (i, 0))
    q, k, v = pl.pallas_call(
        functools.partial(_qkv_kernel, D=D),
        grid=(Mp // tm,),
        in_specs=[row, row,
                  pl.BlockSpec((D, 2 * D), lambda i: (0, 0)),
                  pl.BlockSpec((D, D), lambda i: (0, 0)),
                  pl.BlockSpec((1, 2 * D), lambda i: (0, 0)),
                  pl.BlockSpec((1, D), lambda i: (0, 0))],
        out_specs=[row, row, row],
        out_shape=[jax.ShapeDtypeStruct((Mp, D), jnp.float32)] * 3,
        compiler_params=pltpu.CompilerParams(dimension_semantics=("parallel",)),
    )(x, pos, wqk, wv, bqk.reshape(1, 2 * D), bv.reshape(1, D))
    if Mp != M:
        q, k, v = q[:M], k[:M], v[:M]
    return q, k, v


def _mha_kernel(q_ref, k_ref, v_ref, o_ref, *, nhead, Dh):
    # Lane-dense (S, D) blocks; one head at a time (bounds the SxS score VMEM).
    # TODO(synk): flash-style KV tiling for sequence lengths whose S^2 scores exceed VMEM.
    for h in range(nhead):
        sl = pl.ds(h * Dh, Dh)
        qh = q_ref[0, :, sl].astype(jnp.bfloat16)
        kh = k_ref[0, :, sl].astype(jnp.bfloat16)
        vh = v_ref[0, :, sl].astype(jnp.bfloat16)
        s = jax.lax.dot_general(qh, kh, (((1,), (1,)), ((), ())),
                                preferred_element_type=jnp.float32)      # (S, S)
        m = jnp.max(s, axis=-1, keepdims=True)
        p = jnp.exp(s - m)
        denom = jnp.sum(p, axis=-1, keepdims=True)
        p = p * pl.reciprocal(denom, approx=True)       # EUP, not VPU divide
        oh = jnp.dot(p.astype(jnp.bfloat16), vh, preferred_element_type=jnp.float32)
        o_ref[0, :, sl] = oh.astype(o_ref.dtype)


def mha(q, k, v, nhead):
    """q, k, v: (B, S, D) -> (B, S, D); one grid step per batch, heads looped in-kernel
    so input/output blocks stay lane-dense (no JAX-level head transposes)."""
    B, S, D = q.shape
    Dh = D // nhead
    spec = pl.BlockSpec((1, S, D), lambda b: (b, 0, 0))
    return pl.pallas_call(
        functools.partial(_mha_kernel, nhead=nhead, Dh=Dh),
        grid=(B,),
        in_specs=[spec, spec, spec],
        out_specs=spec,
        out_shape=jax.ShapeDtypeStruct((B, S, D), jnp.float32),
        compiler_params=pltpu.CompilerParams(dimension_semantics=("parallel",)),
    )(q, k, v)


def _proj_add_ln_kernel(a_ref, x_ref, w_ref, b_ref, g_ref, bb_ref, o_ref, *, eps):
    z = x_ref[...] + jnp.dot(a_ref[...].astype(jnp.bfloat16), w_ref[...],
                             preferred_element_type=jnp.float32) + b_ref[...]
    mean = jnp.mean(z, axis=-1, keepdims=True)
    zc = z - mean
    var = jnp.mean(zc * zc, axis=-1, keepdims=True)
    inv = jax.lax.rsqrt(var + eps)
    o_ref[...] = (zc * inv * g_ref[...] + bb_ref[...]).astype(o_ref.dtype)


def attn_out_residual_ln(attn, x, wo, bo, gamma, beta, eps=1e-5, tm=512):
    """LayerNorm(x + (attn @ wo + bo)) fused in one kernel."""
    M, D = x.shape
    tm = min(tm, _round_up(M, 8))
    Mp = _round_up(M, tm)
    if Mp != M:
        attn = jnp.pad(attn, ((0, Mp - M), (0, 0)))
        x = jnp.pad(x, ((0, Mp - M), (0, 0)))
    row = pl.BlockSpec((tm, D), lambda i: (i, 0))
    vec = pl.BlockSpec((1, D), lambda i: (0, 0))
    out = pl.pallas_call(
        functools.partial(_proj_add_ln_kernel, eps=eps),
        grid=(Mp // tm,),
        in_specs=[row, row, pl.BlockSpec((D, D), lambda i: (0, 0)), vec, vec, vec],
        out_specs=row,
        out_shape=jax.ShapeDtypeStruct((Mp, D), jnp.float32),
        compiler_params=pltpu.CompilerParams(dimension_semantics=("parallel",)),
    )(attn, x, wo, bo.reshape(1, D), gamma.reshape(1, D), beta.reshape(1, D))
    return out[:M] if Mp != M else out


def _ffn_ln_kernel(x_ref, w1_ref, b1_ref, w2_ref, b2_ref, g_ref, bb_ref, o_ref, *, eps):
    x = x_ref[...]
    h = jnp.dot(x.astype(jnp.bfloat16), w1_ref[...],
                preferred_element_type=jnp.float32) + b1_ref[...]
    h = jnp.maximum(h, 0.0)
    z = x + jnp.dot(h.astype(jnp.bfloat16), w2_ref[...],
                    preferred_element_type=jnp.float32) + b2_ref[...]
    mean = jnp.mean(z, axis=-1, keepdims=True)
    zc = z - mean
    var = jnp.mean(zc * zc, axis=-1, keepdims=True)
    inv = jax.lax.rsqrt(var + eps)
    o_ref[...] = (zc * inv * g_ref[...] + bb_ref[...]).astype(o_ref.dtype)


def ffn_residual_ln(x, w1, b1, w2, b2, gamma, beta, eps=1e-5, tm=512):
    """LayerNorm(x + (relu(x @ w1 + b1) @ w2 + b2)) fused; FFN intermediate stays in VMEM."""
    M, D = x.shape
    Dff = w1.shape[1]
    tm = min(tm, _round_up(M, 8))
    Mp = _round_up(M, tm)
    if Mp != M:
        x = jnp.pad(x, ((0, Mp - M), (0, 0)))
    row = pl.BlockSpec((tm, D), lambda i: (i, 0))
    out = pl.pallas_call(
        functools.partial(_ffn_ln_kernel, eps=eps),
        grid=(Mp // tm,),
        in_specs=[row,
                  pl.BlockSpec((D, Dff), lambda i: (0, 0)),
                  pl.BlockSpec((1, Dff), lambda i: (0, 0)),
                  pl.BlockSpec((Dff, D), lambda i: (0, 0)),
                  pl.BlockSpec((1, D), lambda i: (0, 0)),
                  pl.BlockSpec((1, D), lambda i: (0, 0)),
                  pl.BlockSpec((1, D), lambda i: (0, 0))],
        out_specs=row,
        out_shape=jax.ShapeDtypeStruct((Mp, D), jnp.float32),
        compiler_params=pltpu.CompilerParams(dimension_semantics=("parallel",)),
    )(x, w1, b1.reshape(1, Dff), w2, b2.reshape(1, D),
      gamma.reshape(1, D), beta.reshape(1, D))
    return out[:M] if Mp != M else out


def encoder_layer(x_md, pos_md, p, B, S, nhead):
    """One post-norm transformer encoder layer on token matrix x_md: (B*S, D)."""
    M, D = x_md.shape
    Dh = D // nhead
    scale = 1.0 / math.sqrt(Dh)
    # Fold 1/sqrt(Dh) into the q half of the fused qk weight; scaled bias stays f32.
    wqk = jnp.concatenate([p["wq"] * scale, p["wk"]], axis=1).astype(jnp.bfloat16)
    bqk = jnp.concatenate([p["bq"] * scale, p["bk"]], axis=0)
    q, k, v = qkv_project(x_md, pos_md, wqk, bqk,
                          p["wv"].astype(jnp.bfloat16), p["bv"], D)

    attn = mha(q.reshape(B, S, D), k.reshape(B, S, D), v.reshape(B, S, D),
               nhead).reshape(M, D)

    x1 = attn_out_residual_ln(attn, x_md, p["wo"].astype(jnp.bfloat16), p["bo"],
                              p["g1"], p["beta1"])
    x2 = ffn_residual_ln(x1, p["w1"].astype(jnp.bfloat16), p["b1ff"],
                         p["w2"].astype(jnp.bfloat16), p["b2ff"],
                         p["g2"], p["beta2"])
    return x2


# ----------------------------------------------------------------------------------
# Glue: nearest resize + sine position embedding (pure JAX, constant per shape)
# ----------------------------------------------------------------------------------

def nearest_resize_nhwc(x, Ho, Wo):
    """F.interpolate(mode='nearest') semantics: src index = floor(dst * in / out)."""
    # TODO(synk): fuse this gather into the lateral dense residual via a scalar-prefetch
    # row-table index_map instead of materializing the upsampled tensor in HBM.
    B, H, W, C = x.shape
    hi = (jnp.arange(Ho) * H // Ho).astype(jnp.int32)
    wi = (jnp.arange(Wo) * W // Wo).astype(jnp.int32)
    return x[:, hi][:, :, wi]


def position_embedding_sine(b, h, w, num_pos_feats, temperature=10000.0):
    """PositionEmbeddingSine(normalize=True), mask=None. Computed once per forward."""
    scale = 2.0 * math.pi
    eps = 1e-6
    ones = jnp.ones((b, h, w), jnp.float32)
    y_embed = jnp.cumsum(ones, axis=1)
    x_embed = jnp.cumsum(ones, axis=2)
    y_embed = y_embed / (y_embed[:, -1:, :] + eps) * scale
    x_embed = x_embed / (x_embed[:, :, -1:] + eps) * scale
    i = jnp.arange(num_pos_feats, dtype=jnp.float32)
    dim_t = temperature ** (2.0 * jnp.floor(i / 2.0) / num_pos_feats)
    pos_x = x_embed[..., None] / dim_t
    pos_y = y_embed[..., None] / dim_t

    def interleave(p):
        s = jnp.sin(p[..., 0::2])
        c = jnp.cos(p[..., 1::2])
        return jnp.stack([s, c], axis=4).reshape(b, h, w, -1)

    pos = jnp.concatenate([interleave(pos_y), interleave(pos_x)], axis=3)
    return jnp.transpose(pos, (0, 3, 1, 2))  # (B, 2*num_pos_feats, H, W)


# ----------------------------------------------------------------------------------
# Full forward_features
# ----------------------------------------------------------------------------------

def transformer_encoder_pixel_decoder(features, params, cfg):
    """features: dict name -> NCHW array (cfg['in_features'] is ascending stride).
    Returns (mask_features NCHW, transformer_encoder_features NCHW)."""
    conv_dim = cfg["conv_dim"]
    nhead = cfg["nhead"]
    in_features = cfg["in_features"]

    y = None
    transformer_encoder_features = None
    for idx, f in enumerate(in_features[::-1]):   # deepest (largest stride) first
        x = jnp.transpose(features[f], (0, 2, 3, 1))   # NCHW -> NHWC
        B, H, W, Cin = x.shape
        if idx == 0:
            # input_proj (1x1 conv) + transformer encoder + output conv
            t = dense(x.reshape(B * H * W, Cin),
                      params["input_proj_w"], params["input_proj_b"])
            pos = position_embedding_sine(B, H, W, conv_dim // 2)      # (B, D, H, W)
            pos_md = jnp.transpose(pos, (0, 2, 3, 1)).reshape(B * H * W, conv_dim)
            for lp in params["layers"]:
                t = encoder_layer(t, pos_md, lp, B, H * W, nhead)
            t_nhwc = t.reshape(B, H, W, conv_dim)
            transformer_encoder_features = jnp.transpose(t_nhwc, (0, 3, 1, 2))
            oc = params["output"][idx]
            y = conv3x3_nhwc(t_nhwc, oc["w"], oc["b"], activation="relu")
        else:
            # lateral 1x1 conv with the nearest-upsampled previous level fused
            # into its epilogue (cur_fpn + F.interpolate(y, nearest)).
            lc = params["lateral"][idx]
            up = nearest_resize_nhwc(y, H, W)
            cur = dense(x.reshape(B * H * W, Cin), lc["w"], lc["b"],
                        residual=up.reshape(B * H * W, conv_dim))
            oc = params["output"][idx]
            y = conv3x3_nhwc(cur.reshape(B, H, W, conv_dim),
                             oc["w"], oc["b"], activation="relu")

    mask = conv3x3_nhwc(y, params["mask_w"], params["mask_b"], activation=None)
    return jnp.transpose(mask, (0, 3, 1, 2)), transformer_encoder_features


# ----------------------------------------------------------------------------------
# Deterministic synthetic parameter init
# ----------------------------------------------------------------------------------

def _init_w(key, shape):
    if len(shape) == 4:  # (3, 3, Cin, Cout)
        fan_in = shape[0] * shape[1] * shape[2]
        fan_out = shape[0] * shape[1] * shape[3]
    else:
        fan_in, fan_out = shape
    bound = math.sqrt(6.0 / (fan_in + fan_out))
    return jax.random.uniform(key, shape, jnp.float32, -bound, bound)


def build_params(key, feature_channels, conv_dim, mask_dim, dff, n_layers):
    keys = iter(jax.random.split(key, 128))
    p = {}
    chans_rev = feature_channels[::-1]  # index 0 = deepest feature

    p["input_proj_w"] = _init_w(next(keys), (chans_rev[0], conv_dim))
    p["input_proj_b"] = jnp.zeros((conv_dim,), jnp.float32)

    p["lateral"] = [None]
    p["output"] = [{
        "w": _init_w(next(keys), (3, 3, conv_dim, conv_dim)),
        "b": jnp.zeros((conv_dim,), jnp.float32),
    }]
    for c in chans_rev[1:]:
        p["lateral"].append({
            "w": _init_w(next(keys), (c, conv_dim)),
            "b": jnp.zeros((conv_dim,), jnp.float32),
        })
        p["output"].append({
            "w": _init_w(next(keys), (3, 3, conv_dim, conv_dim)),
            "b": jnp.zeros((conv_dim,), jnp.float32),
        })

    p["mask_w"] = _init_w(next(keys), (3, 3, conv_dim, mask_dim))
    p["mask_b"] = jnp.zeros((mask_dim,), jnp.float32)

    layers = []
    for _ in range(n_layers):
        layers.append({
            "wq": _init_w(next(keys), (conv_dim, conv_dim)),
            "bq": jnp.zeros((conv_dim,), jnp.float32),
            "wk": _init_w(next(keys), (conv_dim, conv_dim)),
            "bk": jnp.zeros((conv_dim,), jnp.float32),
            "wv": _init_w(next(keys), (conv_dim, conv_dim)),
            "bv": jnp.zeros((conv_dim,), jnp.float32),
            "wo": _init_w(next(keys), (conv_dim, conv_dim)),
            "bo": jnp.zeros((conv_dim,), jnp.float32),
            "w1": _init_w(next(keys), (conv_dim, dff)),
            "b1ff": jnp.zeros((dff,), jnp.float32),
            "w2": _init_w(next(keys), (dff, conv_dim)),
            "b2ff": jnp.zeros((conv_dim,), jnp.float32),
            "g1": jnp.ones((conv_dim,), jnp.float32),
            "beta1": jnp.zeros((conv_dim,), jnp.float32),
            "g2": jnp.ones((conv_dim,), jnp.float32),
            "beta2": jnp.zeros((conv_dim,), jnp.float32),
        })
    p["layers"] = layers
    return p


# ----------------------------------------------------------------------------------

if __name__ == "__main__":
    # Small synthetic config: two pyramid levels.
    #   res2: channels=4, stride=4, spatial 16x16
    #   res3: channels=8, stride=8, spatial  8x8  (deepest -> transformer)
    cfg = {
        "in_features": ["res2", "res3"],   # ascending stride
        "conv_dim": 32,
        "mask_dim": 16,
        "nhead": 4,
        "dim_feedforward": 64,
        "enc_layers": 2,
    }
    feature_channels = [4, 8]

    key = jax.random.PRNGKey(0)
    k_feat, k_param = jax.random.split(key)
    k2, k3 = jax.random.split(k_feat)
    features = {
        "res2": jax.random.normal(k2, (2, 4, 16, 16), jnp.float32),  # NCHW
        "res3": jax.random.normal(k3, (2, 8, 8, 8), jnp.float32),    # NCHW
    }

    params = build_params(
        k_param, feature_channels, cfg["conv_dim"], cfg["mask_dim"],
        cfg["dim_feedforward"], cfg["enc_layers"],
    )

    mask_feats, tr_feats = transformer_encoder_pixel_decoder(features, params, cfg)
    mask_feats = jax.block_until_ready(mask_feats)
    tr_feats = jax.block_until_ready(tr_feats)

    assert mask_feats.shape == (2, cfg["mask_dim"], 16, 16)
    assert tr_feats.shape == (2, cfg["conv_dim"], 8, 8)
    assert jnp.all(jnp.isfinite(mask_feats)) and jnp.all(jnp.isfinite(tr_feats))
    print("KERNEL_OK")
</pallas_src>

<mosaic_0001>
module attributes {stable_mosaic.version = 11 : i64} {
  func.func @_dense_kernel(%arg0: i32, %arg1: i32, %arg2: memref<128x8xf32, #tpu.memory_space<vmem>>, %arg3: memref<8x32xbf16, #tpu.memory_space<vmem>>, %arg4: memref<1x32xf32, #tpu.memory_space<vmem>>, %arg5: memref<128x32xf32, #tpu.memory_space<vmem>>) attributes {dimension_semantics = [#tpu.dimension_semantics<parallel>, #tpu.dimension_semantics<arbitrary>], iteration_bounds = array<i64: 1, 1>, scalar_prefetch = 0 : i64, scratch_operands = 0 : i64, tpu.core_type = #tpu.core_type<tc>, window_params = [{transform_indices = @transform_0, window_bounds = array<i64: 128, 8>}, {transform_indices = @transform_1, window_bounds = array<i64: 8, 32>}, {pipeline_mode = #tpu.pipeline_mode<synchronous>, transform_indices = @transform_2, window_bounds = array<i64: 1, 32>}, {transform_indices = @transform_3, window_bounds = array<i64: 128, 32>}]} {
    %c0_i32 = arith.constant 0 : i32
    %0 = arith.cmpi eq, %arg1, %c0_i32 : i32
    %1 = arith.extui %0 : i1 to i32
    %c0_i32_0 = arith.constant 0 : i32
    %2 = arith.cmpi ne, %1, %c0_i32_0 : i32
    scf.if %2 {
      %cst_10 = arith.constant 0.000000e+00 : f32
      %13 = vector.broadcast %cst_10 : f32 to vector<128x32xf32>
      %c0_11 = arith.constant 0 : index
      %c0_12 = arith.constant 0 : index
      %14 = vector.load %arg5[%c0_11, %c0_12] : memref<128x32xf32, #tpu.memory_space<vmem>>, vector<128x32xf32>
      tpu.vector_store %arg5[%c0_11, %c0_12], %13 {strides = array<i32>} : memref<128x32xf32, #tpu.memory_space<vmem>>, vector<128x32xf32>,
    } else {
    }
    %c0 = arith.constant 0 : index
    %c0_1 = arith.constant 0 : index
    %3 = vector.load %arg5[%c0, %c0_1] : memref<128x32xf32, #tpu.memory_space<vmem>>, vector<128x32xf32>
    %c0_2 = arith.constant 0 : index
    %c0_3 = arith.constant 0 : index
    %4 = vector.load %arg2[%c0_2, %c0_3] : memref<128x8xf32, #tpu.memory_space<vmem>>, vector<128x8xf32>
    %5 = arith.truncf %4 : vector<128x8xf32> to vector<128x8xbf16>
    %c0_4 = arith.constant 0 : index
    %c0_5 = arith.constant 0 : index
    %6 = vector.load %arg3[%c0_4, %c0_5] : memref<8x32xbf16, #tpu.memory_space<vmem>>, vector<8x32xbf16>
    %cst = arith.constant dense<0.000000e+00> : vector<128x32xf32>
    %7 = tpu.matmul %5, %6, %cst {dimension_numbers = #tpu.dot_dimension_numbers<[1], [0], [0], [1], [0, 0, 1, 1], [], []>} : vector<128x8xbf16>, vector<8x32xbf16>, vector<128x32xf32> -> vector<128x32xf32>
    %8 = arith.addf %3, %7 : vector<128x32xf32>
    %c0_6 = arith.constant 0 : index
    %c0_7 = arith.constant 0 : index
    %9 = vector.load %arg5[%c0_6, %c0_7] : memref<128x32xf32, #tpu.memory_space<vmem>>, vector<128x32xf32>
    tpu.vector_store %arg5[%c0_6, %c0_7], %8 {strides = array<i32>} : memref<128x32xf32, #tpu.memory_space<vmem>>, vector<128x32xf32>,
    %c0_i32_8 = arith.constant 0 : i32
    %10 = arith.cmpi eq, %arg1, %c0_i32_8 : i32
    %11 = arith.extui %10 : i1 to i32
    %c0_i32_9 = arith.constant 0 : i32
    %12 = arith.cmpi ne, %11, %c0_i32_9 : i32
    scf.if %12 {
      %c0_10 = arith.constant 0 : index
      %c0_11 = arith.constant 0 : index
      %13 = vector.load %arg5[%c0_10, %c0_11] : memref<128x32xf32, #tpu.memory_space<vmem>>, vector<128x32xf32>
      %c0_12 = arith.constant 0 : index
      %c0_13 = arith.constant 0 : index
      %14 = vector.load %arg4[%c0_12, %c0_13] : memref<1x32xf32, #tpu.memory_space<vmem>>, vector<1x32xf32>
      %15 = vector.broadcast %14 : vector<1x32xf32> to vector<128x32xf32>
      %16 = arith.addf %13, %15 : vector<128x32xf32>
      %c0_14 = arith.constant 0 : index
      %c0_15 = arith.constant 0 : index
      %17 = vector.load %arg5[%c0_14, %c0_15] : memref<128x32xf32, #tpu.memory_space<vmem>>, vector<128x32xf32>
      tpu.vector_store %arg5[%c0_14, %c0_15], %16 {strides = array<i32>} : memref<128x32xf32, #tpu.memory_space<vmem>>, vector<128x32xf32>,
    } else {
    }
    return
  }
  func.func @transform_0(%arg0: i32, %arg1: i32) -> (i32, i32) {
    %c0_i32 = arith.constant 0 : i32
    return %arg0, %arg1 : i32, i32
  }
  func.func @transform_1(%arg0: i32, %arg1: i32) -> (i32, i32) {
    %c0_i32 = arith.constant 0 : i32
    %c0_i32_0 = arith.constant 0 : i32
    return %arg1, %c0_i32 : i32, i32
  }
  func.func @transform_2(%arg0: i32, %arg1: i32) -> (i32, i32) {
    %c0_i32 = arith.constant 0 : i32
    %c0_i32_0 = arith.constant 0 : i32
    %c0_i32_1 = arith.constant 0 : i32
    return %c0_i32, %c0_i32_0 : i32, i32
  }
  func.func @transform_3(%arg0: i32, %arg1: i32) -> (i32, i32) {
    %c0_i32 = arith.constant 0 : i32
    %c0_i32_0 = arith.constant 0 : i32
    return %arg0, %c0_i32 : i32, i32
  }
}

</mosaic_0001>

<llo_original>
// kernel: tpu_custom_call.1
$region0: #{tpu_custom_call.1}
  #allocation0 [shape = 'u32[]', space=smem, size = 0x4, offset = 0x4, fixed_abs, tag = 'smem constant byte address 0x4 - core index']
  #allocation1 [shape = 'u32[72,128]{1,0:T(1,128)}', space=vmem, size = 0x9000, scoped, tag = 'internal scratch']
  %s0 = inlined_call_operand.vmem [shape: f32[128,8], index: 0, kind: input, shape index: {}]
  %s1 = inlined_call_operand.vmem [shape: bf16[8,32], index: 1, kind: input, shape index: {}]
  %s2 = inlined_call_operand.vmem [shape: f32[1,32], index: 2, kind: input, shape index: {}]
  %s3 = inlined_call_operand.vmem [shape: f32[128,32], index: 3, kind: output, shape index: {}]
  %s4 = sld [smem:[#allocation0]]
  $region30: #{tpu_custom_call.1} parent=0
    _
  %s6 = ssub.s32 1, %s4
  %s7 = scalar_select 0, %s6, %s4
  // Predicated region
  $region2: #{tpu_custom_call.1} parent=0 // pred_check
    _
  $region3: #{tpu_custom_call.1} parent=0 // pred_check_branch
    %9 = sbr.rel (0) target = $region5
  $region4: #{tpu_custom_call.1} parent=0 // pred_region
    _
  $region5: #{tpu_custom_call.1} parent=0 // pred_fallthru
    _
  // Predicated region
  $region6: #{tpu_custom_call.1} parent=0 // pred_check
    _
  $region7: #{tpu_custom_call.1} parent=0 // pred_check_branch
    %11 = sbr.rel (0) target = $region9
  $region8: #{tpu_custom_call.1} parent=0 // pred_region
    _
  $region9: #{tpu_custom_call.1} parent=0 // pred_fallthru
    _
  // Predicated region
  $region10: #{tpu_custom_call.1} parent=0 // pred_check
    _
  $region11: #{tpu_custom_call.1} parent=0 // pred_check_branch
    %13 = sbr.rel (0) target = $region13
  $region12: #{tpu_custom_call.1} parent=0 // pred_region
    _
  $region13: #{tpu_custom_call.1} parent=0 // pred_fallthru
    _
  %p15 = scmp.eq.s32.totalorder 0, 0
  // Predicated region
  $region14: #{tpu_custom_call.1} parent=0 // pred_check
    %p16 = pneg %p15
  $region15: #{tpu_custom_call.1} parent=0 // pred_check_branch
    %18 = sbr.rel (%p16) target = $region17
  $region16: #{tpu_custom_call.1} parent=0 // pred_region
    %vm19 = vcmask 261120
    %20 = vst.msk [vmem:[%s3] sm:$0xff] %vm19, 0.0
    %21 = vst.msk [vmem:[%s3 + $0x8] sm:$0xff] %vm19, 0.0
    %22 = vst.msk [vmem:[%s3 + $0x10] sm:$0xff] %vm19, 0.0
    %23 = vst.msk [vmem:[%s3 + $0x18] sm:$0xff] %vm19, 0.0
    %24 = vst.msk [vmem:[%s3 + $0x20] sm:$0xff] %vm19, 0.0
    %25 = vst.msk [vmem:[%s3 + $0x28] sm:$0xff] %vm19, 0.0
    %26 = vst.msk [vmem:[%s3 + $0x30] sm:$0xff] %vm19, 0.0
    %27 = vst.msk [vmem:[%s3 + $0x38] sm:$0xff] %vm19, 0.0
    %28 = vst.msk [vmem:[%s3 + $0x40] sm:$0xff] %vm19, 0.0
    %29 = vst.msk [vmem:[%s3 + $0x48] sm:$0xff] %vm19, 0.0
    %30 = vst.msk [vmem:[%s3 + $0x50] sm:$0xff] %vm19, 0.0
    %31 = vst.msk [vmem:[%s3 + $0x58] sm:$0xff] %vm19, 0.0
    %32 = vst.msk [vmem:[%s3 + $0x60] sm:$0xff] %vm19, 0.0
    %33 = vst.msk [vmem:[%s3 + $0x68] sm:$0xff] %vm19, 0.0
    %34 = vst.msk [vmem:[%s3 + $0x70] sm:$0xff] %vm19, 0.0
    %35 = vst.msk [vmem:[%s3 + $0x78] sm:$0xff] %vm19, 0.0
  $region17: #{tpu_custom_call.1} parent=0 // pred_fallthru
    _
  %v36 = vld [vmem:[%s3] sm:$0xff]
  %v37 = vld [vmem:[%s3 + $0x8] sm:$0xff]
  %v38 = vld [vmem:[%s3 + $0x10] sm:$0xff]
  %v39 = vld [vmem:[%s3 + $0x18] sm:$0xff]
  %v40 = vld [vmem:[%s3 + $0x20] sm:$0xff]
  %v41 = vld [vmem:[%s3 + $0x28] sm:$0xff]
  %v42 = vld [vmem:[%s3 + $0x30] sm:$0xff]
  %v43 = vld [vmem:[%s3 + $0x38] sm:$0xff]
  %v44 = vld [vmem:[%s3 + $0x40] sm:$0xff]
  %v45 = vld [vmem:[%s3 + $0x48] sm:$0xff]
  %v46 = vld [vmem:[%s3 + $0x50] sm:$0xff]
  %v47 = vld [vmem:[%s3 + $0x58] sm:$0xff]
  %v48 = vld [vmem:[%s3 + $0x60] sm:$0xff]
  %v49 = vld [vmem:[%s3 + $0x68] sm:$0xff]
  %v50 = vld [vmem:[%s3 + $0x70] sm:$0xff]
  %v51 = vld [vmem:[%s3 + $0x78] sm:$0xff]
  %v52 = vld [vmem:[%s0] sm:$0xff]
  %v53 = vld [vmem:[%s0 + $0x8] sm:$0xff]
  %v54 = vld [vmem:[%s0 + $0x10] sm:$0xff]
  %v55 = vld [vmem:[%s0 + $0x18] sm:$0xff]
  %v56 = vld [vmem:[%s0 + $0x20] sm:$0xff]
  %v57 = vld [vmem:[%s0 + $0x28] sm:$0xff]
  %v58 = vld [vmem:[%s0 + $0x30] sm:$0xff]
  %v59 = vld [vmem:[%s0 + $0x38] sm:$0xff]
  %v60 = vld [vmem:[%s0 + $0x40] sm:$0xff]
  %v61 = vld [vmem:[%s0 + $0x48] sm:$0xff]
  %v62 = vld [vmem:[%s0 + $0x50] sm:$0xff]
  %v63 = vld [vmem:[%s0 + $0x58] sm:$0xff]
  %v64 = vld [vmem:[%s0 + $0x60] sm:$0xff]
  %v65 = vld [vmem:[%s0 + $0x68] sm:$0xff]
  %v66 = vld [vmem:[%s0 + $0x70] sm:$0xff]
  %v67 = vld [vmem:[%s0 + $0x78] sm:$0xff]
  %v68 = vpack.c.bf16 %v53, %v52
  %v69 = vpack.c.bf16 %v55, %v54
  %v70 = vpack.c.bf16 %v57, %v56
  %v71 = vpack.c.bf16 %v59, %v58
  %v72 = vpack.c.bf16 %v61, %v60
  %v73 = vpack.c.bf16 %v63, %v62
  %v74 = vpack.c.bf16 %v65, %v64
  %v75 = vpack.c.bf16 %v67, %v66
  %v76 = vld [vmem:[%s1] sm:$0xf]
  %vm77 = vcmask 64512
  %v79 = vsel %vm77, %v68, 0
  %v82 = vsel %vm77, %v69, 0
  %v85 = vsel %vm77, %v70, 0
  %v88 = vsel %vm77, %v71, 0
  %v91 = vsel %vm77, %v72, 0
  %v94 = vsel %vm77, %v73, 0
  %v97 = vsel %vm77, %v74, 0
  %v100 = vsel %vm77, %v75, 0
  %vm102 = vcmask 1043456
  %v104 = vsel %vm102, %v76, 0
  %106 = vmatpush.bf16.msra.mxu0 0
  %107 = vmatpush.bf16.msra.mxu0 0
  %108 = vmatpush.bf16.msra.mxu0 0
  %109 = vmatpush.bf16.msra.mxu0 0
  %110 = vmatpush.bf16.msra.mxu0 0
  %111 = vmatpush.bf16.msra.mxu0 0
  %112 = vmatpush.bf16.msra.mxu0 0
  %113 = vmatpush.bf16.msra.mxu0 %v104
  %114 = vmatmul.bf16.gmra.mxu0 %v79
  %v115 = vpop.f32.mrf.mxu0
  %v116 = vadd.f32 0.0, %v115
  %v117 = vpop.f32.mrf.mxu0
  %v118 = vadd.f32 0.0, %v117
  %119 = vmatmul.bf16.gmra.mxu0 %v82
  %v120 = vpop.f32.mrf.mxu0
  %v121 = vadd.f32 0.0, %v120
  %v122 = vpop.f32.mrf.mxu0
  %v123 = vadd.f32 0.0, %v122
  %124 = vmatmul.bf16.gmra.mxu0 %v85
  %v125 = vpop.f32.mrf.mxu0
  %v126 = vadd.f32 0.0, %v125
  %v127 = vpop.f32.mrf.mxu0
  %v128 = vadd.f32 0.0, %v127
  %129 = vmatmul.bf16.gmra.mxu0 %v88
  %v130 = vpop.f32.mrf.mxu0
  %v131 = vadd.f32 0.0, %v130
  %v132 = vpop.f32.mrf.mxu0
  %v133 = vadd.f32 0.0, %v132
  %134 = vmatmul.bf16.gmra.mxu0 %v91
  %v135 = vpop.f32.mrf.mxu0
  %v136 = vadd.f32 0.0, %v135
  %v137 = vpop.f32.mrf.mxu0
  %v138 = vadd.f32 0.0, %v137
  %139 = vmatmul.bf16.gmra.mxu0 %v94
  %v140 = vpop.f32.mrf.mxu0
  %v141 = vadd.f32 0.0, %v140
  %v142 = vpop.f32.mrf.mxu0
  %v143 = vadd.f32 0.0, %v142
  %144 = vmatmul.bf16.gmra.mxu0 %v97
  %v145 = vpop.f32.mrf.mxu0
  %v146 = vadd.f32 0.0, %v145
  %v147 = vpop.f32.mrf.mxu0
  %v148 = vadd.f32 0.0, %v147
  %149 = vmatmul.bf16.gmra.mxu0 %v100
  %v150 = vpop.f32.mrf.mxu0
  %v151 = vadd.f32 0.0, %v150
  %v152 = vpop.f32.mrf.mxu0
  %v153 = vadd.f32 0.0, %v152
  %154 = vdwg.mxu0
  %v155 = vadd.f32 %v36, %v116
  %v156 = vadd.f32 %v37, %v118
  %v157 = vadd.f32 %v38, %v121
  %v158 = vadd.f32 %v39, %v123
  %v159 = vadd.f32 %v40, %v126
  %v160 = vadd.f32 %v41, %v128
  %v161 = vadd.f32 %v42, %v131
  %v162 = vadd.f32 %v43, %v133
  %v163 = vadd.f32 %v44, %v136
  %v164 = vadd.f32 %v45, %v138
  %v165 = vadd.f32 %v46, %v141
  %v166 = vadd.f32 %v47, %v143
  %v167 = vadd.f32 %v48, %v146
  %v168 = vadd.f32 %v49, %v148
  %v169 = vadd.f32 %v50, %v151
  %v170 = vadd.f32 %v51, %v153
  %vm171 = vcmask 261120
  %172 = vst.msk [vmem:[%s3] sm:$0xff] %vm171, %v155
  %173 = vst.msk [vmem:[%s3 + $0x8] sm:$0xff] %vm171, %v156
  %174 = vst.msk [vmem:[%s3 + $0x10] sm:$0xff] %vm171, %v157
  %175 = vst.msk [vmem:[%s3 + $0x18] sm:$0xff] %vm171, %v158
  %176 = vst.msk [vmem:[%s3 + $0x20] sm:$0xff] %vm171, %v159
  %177 = vst.msk [vmem:[%s3 + $0x28] sm:$0xff] %vm171, %v160
  %178 = vst.msk [vmem:[%s3 + $0x30] sm:$0xff] %vm171, %v161
  %179 = vst.msk [vmem:[%s3 + $0x38] sm:$0xff] %vm171, %v162
  %180 = vst.msk [vmem:[%s3 + $0x40] sm:$0xff] %vm171, %v163
  %181 = vst.msk [vmem:[%s3 + $0x48] sm:$0xff] %vm171, %v164
  %182 = vst.msk [vmem:[%s3 + $0x50] sm:$0xff] %vm171, %v165
  %183 = vst.msk [vmem:[%s3 + $0x58] sm:$0xff] %vm171, %v166
  %184 = vst.msk [vmem:[%s3 + $0x60] sm:$0xff] %vm171, %v167
  %185 = vst.msk [vmem:[%s3 + $0x68] sm:$0xff] %vm171, %v168
  %186 = vst.msk [vmem:[%s3 + $0x70] sm:$0xff] %vm171, %v169
  %187 = vst.msk [vmem:[%s3 + $0x78] sm:$0xff] %vm171, %v170
  // Predicated region
  $region18: #{tpu_custom_call.1} parent=0 // pred_check
    %p188 = pneg %p15
  $region19: #{tpu_custom_call.1} parent=0 // pred_check_branch
    %190 = sbr.rel (%p188) target = $region21
  $region20: #{tpu_custom_call.1} parent=0 // pred_region
    %v191 = vld [vmem:[%s3] sm:$0xff]
    %v192 = vld [vmem:[%s3 + $0x8] sm:$0xff]
    %v193 = vld [vmem:[%s3 + $0x10] sm:$0xff]
    %v194 = vld [vmem:[%s3 + $0x18] sm:$0xff]
    %v195 = vld [vmem:[%s3 + $0x20] sm:$0xff]
    %v196 = vld [vmem:[%s3 + $0x28] sm:$0xff]
    %v197 = vld [vmem:[%s3 + $0x30] sm:$0xff]
    %v198 = vld [vmem:[%s3 + $0x38] sm:$0xff]
    %v199 = vld [vmem:[%s3 + $0x40] sm:$0xff]
    %v200 = vld [vmem:[%s3 + $0x48] sm:$0xff]
    %v201 = vld [vmem:[%s3 + $0x50] sm:$0xff]
    %v202 = vld [vmem:[%s3 + $0x58] sm:$0xff]
    %v203 = vld [vmem:[%s3 + $0x60] sm:$0xff]
    %v204 = vld [vmem:[%s3 + $0x68] sm:$0xff]
    %v205 = vld [vmem:[%s3 + $0x70] sm:$0xff]
    %v206 = vld [vmem:[%s3 + $0x78] sm:$0xff]
    %v207 = vld [vmem:[%s2] sm:$0x1]
    %v209 = vperm.slane %v207, 0
    %v211 = vadd.f32 %v191, %v209
    %v212 = vadd.f32 %v192, %v209
    %v213 = vadd.f32 %v193, %v209
    %v214 = vadd.f32 %v194, %v209
    %v215 = vadd.f32 %v195, %v209
    %v216 = vadd.f32 %v196, %v209
    %v217 = vadd.f32 %v197, %v209
    %v218 = vadd.f32 %v198, %v209
    %v219 = vadd.f32 %v199, %v209
    %v220 = vadd.f32 %v200, %v209
    %v221 = vadd.f32 %v201, %v209
    %v222 = vadd.f32 %v202, %v209
    %v223 = vadd.f32 %v203, %v209
    %v224 = vadd.f32 %v204, %v209
    %v225 = vadd.f32 %v205, %v209
    %v226 = vadd.f32 %v206, %v209
    %227 = vst.msk [vmem:[%s3] sm:$0xff] %vm171, %v211
    %228 = vst.msk [vmem:[%s3 + $0x8] sm:$0xff] %vm171, %v212
    %229 = vst.msk [vmem:[%s3 + $0x10] sm:$0xff] %vm171, %v213
    %230 = vst.msk [vmem:[%s3 + $0x18] sm:$0xff] %vm171, %v214
    %231 = vst.msk [vmem:[%s3 + $0x20] sm:$0xff] %vm171, %v215
    %232 = vst.msk [vmem:[%s3 + $0x28] sm:$0xff] %vm171, %v216
    %233 = vst.msk [vmem:[%s3 + $0x30] sm:$0xff] %vm171, %v217
    %234 = vst.msk [vmem:[%s3 + $0x38] sm:$0xff] %vm171, %v218
    %235 = vst.msk [vmem:[%s3 + $0x40] sm:$0xff] %vm171, %v219
    %236 = vst.msk [vmem:[%s3 + $0x48] sm:$0xff] %vm171, %v220
    %237 = vst.msk [vmem:[%s3 + $0x50] sm:$0xff] %vm171, %v221
    %238 = vst.msk [vmem:[%s3 + $0x58] sm:$0xff] %vm171, %v222
    %239 = vst.msk [vmem:[%s3 + $0x60] sm:$0xff] %vm171, %v223
    %240 = vst.msk [vmem:[%s3 + $0x68] sm:$0xff] %vm171, %v224
    %241 = vst.msk [vmem:[%s3 + $0x70] sm:$0xff] %vm171, %v225
    %242 = vst.msk [vmem:[%s3 + $0x78] sm:$0xff] %vm171, %v226
  $region21: #{tpu_custom_call.1} parent=0 // pred_fallthru
    _
  // Predicated region
  $region22: #{tpu_custom_call.1} parent=0 // pred_check
    _
  $region23: #{tpu_custom_call.1} parent=0 // pred_check_branch
    %244 = sbr.rel (0) target = $region25
  $region24: #{tpu_custom_call.1} parent=0 // pred_region
    _
  $region25: #{tpu_custom_call.1} parent=0 // pred_fallthru
    _
  // Predicated region
  $region26: #{tpu_custom_call.1} parent=0 // pred_check
    _
  $region27: #{tpu_custom_call.1} parent=0 // pred_check_branch
    %246 = sbr.rel (0) target = $region29
  $region28: #{tpu_custom_call.1} parent=0 // pred_region
    _
  $region29: #{tpu_custom_call.1} parent=0 // pred_fallthru
    _

</llo_original>
